<compile_context>
chip_gen: v7x
topology: tpu7x:2x2x1
jax: 0.10.0
libtpu: 0.0.40
codegen_flags: <defaults>
</compile_context>

<pallas_src>
import jax
import jax.numpy as jnp
from jax import lax
from jax.experimental import pallas as pl
from jax.experimental.pallas import tpu as pltpu


def _logreg_kernel(x_ref, w_ref, b_ref, o_ref):
    # x_ref: (TB, N) f32 VMEM | w_ref: (1, N) f32 VMEM | b_ref: (1, 1) f32 VMEM
    # o_ref: (1, TB) f32 VMEM  (lane-dense: batch lives on the lane axis)
    #
    # (1, N) . (TB, N) contracting on N  ->  (1, TB)
    # (same contraction pattern as q @ k^T in flash attention)
    z = lax.dot_general(
        w_ref[...], x_ref[...],
        dimension_numbers=(((1,), (1,)), ((), ())),
        preferred_element_type=jnp.float32,
        precision=lax.Precision.HIGHEST)        # full-precision f32 MXU passes
    z = z + b_ref[0, 0]
    # Exact sigmoid: exp on the EUP, exact divide on the VPU. The kernel is
    # memory-bound, so these are free relative to the x-tile DMA.
    o_ref[...] = (1.0 / (1.0 + jnp.exp(-z))).astype(o_ref.dtype)


def _choose_batch_tile(batch, ninput):
    """Pick TB: big enough to amortize the ~0.35us/step grid overhead, small enough
    that the double-buffered f32 x tile fits comfortably in scoped VMEM on all of
    v5e / v6e / v7x (v7x: 64 MiB physical)."""
    tile_budget = 16 * 1024 * 1024                  # bytes for 2 x (TB, N) f32 buffers
    rows = tile_budget // max(1, 2 * ninput * 4)
    rows = max(128, (rows // 128) * 128)            # multiple of 128 -> lane-dense out
    tb = min(2048, rows)
    if batch <= tb:
        return batch                                # single tile: block == full dims
    # TODO(synk): for feature dims so wide that even 128 rows blow the VMEM budget,
    # add a K-reduction grid axis with a VMEM accumulator; not needed at these shapes.
    return tb


def logistic_regression(x, weight, bias):
    """Forward of `torch.sigmoid(nn.Linear(ninput, 1)(x))`.

    x:      (B, N) f32
    weight: (1, N) f32   -- nn.Linear.weight, used as-is (no pre-transpose needed)
    bias:   (1,)   f32   -- nn.Linear.bias
    returns (B, 1) f32
    """
    B, N = x.shape
    x = x.astype(jnp.float32)
    w = weight.reshape(1, N).astype(jnp.float32)
    b = jnp.asarray(bias, jnp.float32).reshape(1, 1)

    tb = _choose_batch_tile(B, N)
    num_tiles = pl.cdiv(B, tb)
    bp = num_tiles * tb
    if bp != B:                                     # pad so every batch tile is full
        x = jnp.pad(x, ((0, bp - B), (0, 0)))

    # Raise scoped VMEM above v5e's 16 MiB default; stays well under v7x's 64 MiB.
    tile_bytes = 2 * (tb * N * 4) + 2 * (N * 4) + 2 * (tb * 4)
    vmem_limit = int(min(56 * 1024 * 1024, max(16 * 1024 * 1024, 2 * tile_bytes)))

    out = pl.pallas_call(
        _logreg_kernel,
        out_shape=jax.ShapeDtypeStruct((1, bp), jnp.float32),
        grid_spec=pltpu.PrefetchScalarGridSpec(
            num_scalar_prefetch=0,
            grid=(num_tiles,),                                     # batch tiles
            in_specs=[
                pl.BlockSpec((tb, N), lambda i: (i, 0)),           # x tile (pipelined)
                pl.BlockSpec((1, N), lambda i: (0, 0)),            # weight resident
                pl.BlockSpec((1, 1), lambda i: (0, 0)),            # bias resident
            ],
            out_specs=pl.BlockSpec((1, tb), lambda i: (0, i)),     # lane-dense output
        ),
        compiler_params=pltpu.CompilerParams(
            dimension_semantics=("parallel",),                     # megacore on v7x
            vmem_limit_bytes=vmem_limit),
    )(x, w, b)

    if bp != B:
        out = out[:, :B]
    return out.reshape(B, 1)


if __name__ == "__main__":
    batch, ninput = 8, 32

    key = jax.random.PRNGKey(0)
    kx, kw, kb = jax.random.split(key, 3)

    # Deterministic synthetic parameters with nn.Linear(ninput, 1) shapes.
    bound = 1.0 / (ninput ** 0.5)
    x = jax.random.normal(kx, (batch, ninput), dtype=jnp.float32)
    weight = jax.random.uniform(kw, (1, ninput), dtype=jnp.float32,
                                minval=-bound, maxval=bound)   # nn.Linear.weight
    bias = jax.random.uniform(kb, (1,), dtype=jnp.float32,
                              minval=-bound, maxval=bound)     # nn.Linear.bias

    out = jax.block_until_ready(logistic_regression(x, weight, bias))

    # Reference check in plain JAX (exact sigmoid + highest-precision dot).
    ref = jax.nn.sigmoid(x @ weight.T + bias)
    assert out.shape == (batch, 1)
    assert jnp.allclose(out, ref, atol=1e-5, rtol=1e-5), float(jnp.abs(out - ref).max())

    print("KERNEL_OK")
</pallas_src>

<mosaic_0001>
module attributes {stable_mosaic.version = 11 : i64} {
  func.func @_logreg_kernel(%arg0: i32, %arg1: memref<8x32xf32, #tpu.memory_space<vmem>>, %arg2: memref<1x32xf32, #tpu.memory_space<vmem>>, %arg3: memref<1x1xf32, #tpu.memory_space<vmem>>, %arg4: memref<1x8xf32, #tpu.memory_space<vmem>>) attributes {dimension_semantics = [#tpu.dimension_semantics<parallel>], iteration_bounds = array<i64: 1>, scalar_prefetch = 0 : i64, scratch_operands = 0 : i64, tpu.core_type = #tpu.core_type<tc>, window_params = [{transform_indices = @transform_0, window_bounds = array<i64: 8, 32>}, {pipeline_mode = #tpu.pipeline_mode<synchronous>, transform_indices = @transform_1, window_bounds = array<i64: 1, 32>}, {pipeline_mode = #tpu.pipeline_mode<synchronous>, transform_indices = @transform_2, window_bounds = array<i64: 1, 1>}, {transform_indices = @transform_3, window_bounds = array<i64: 1, 8>}]} {
    %c0 = arith.constant 0 : index
    %c0_0 = arith.constant 0 : index
    %0 = vector.load %arg2[%c0, %c0_0] : memref<1x32xf32, #tpu.memory_space<vmem>>, vector<1x32xf32>
    %c0_1 = arith.constant 0 : index
    %c0_2 = arith.constant 0 : index
    %1 = vector.load %arg1[%c0_1, %c0_2] : memref<8x32xf32, #tpu.memory_space<vmem>>, vector<8x32xf32>
    %cst = arith.constant dense<0.000000e+00> : vector<1x8xf32>
    %2 = tpu.matmul %0, %1, %cst {dimension_numbers = #tpu.dot_dimension_numbers<[1], [1], [0], [0], [0, 0, 1, 0], [], []>, precision = #tpu.contract_precision<fp32>} : vector<1x32xf32>, vector<8x32xf32>, vector<1x8xf32> -> vector<1x8xf32>
    %c0_3 = arith.constant 0 : index
    %c0_4 = arith.constant 0 : index
    %3 = vector.load %arg3[%c0_3, %c0_4] : memref<1x1xf32, #tpu.memory_space<vmem>>, vector<1x1xf32>
    %4 = vector.extract %3[0, 0] : f32 from vector<1x1xf32>
    %5 = vector.broadcast %4 : f32 to vector<1x8xf32>
    %6 = arith.addf %2, %5 : vector<1x8xf32>
    %cst_5 = arith.constant 0.000000e+00 : f32
    %7 = vector.broadcast %cst_5 : f32 to vector<1x8xf32>
    %8 = arith.subf %7, %6 : vector<1x8xf32>
    %9 = math.exp %8 : vector<1x8xf32>
    %cst_6 = arith.constant 1.000000e+00 : f32
    %10 = vector.broadcast %cst_6 : f32 to vector<1x8xf32>
    %11 = arith.addf %10, %9 : vector<1x8xf32>
    %cst_7 = arith.constant 1.000000e+00 : f32
    %12 = vector.broadcast %cst_7 : f32 to vector<1x8xf32>
    %13 = arith.divf %12, %11 : vector<1x8xf32>
    %c0_8 = arith.constant 0 : index
    %c0_9 = arith.constant 0 : index
    %14 = vector.load %arg4[%c0_8, %c0_9] : memref<1x8xf32, #tpu.memory_space<vmem>>, vector<1x8xf32>
    tpu.vector_store %arg4[%c0_8, %c0_9], %13 {strides = array<i32>} : memref<1x8xf32, #tpu.memory_space<vmem>>, vector<1x8xf32>,
    return
  }
  func.func @transform_0(%arg0: i32) -> (i32, i32) {
    %c0_i32 = arith.constant 0 : i32
    %c0_i32_0 = arith.constant 0 : i32
    return %arg0, %c0_i32 : i32, i32
  }
  func.func @transform_1(%arg0: i32) -> (i32, i32) {
    %c0_i32 = arith.constant 0 : i32
    %c0_i32_0 = arith.constant 0 : i32
    %c0_i32_1 = arith.constant 0 : i32
    return %c0_i32, %c0_i32_0 : i32, i32
  }
  func.func @transform_2(%arg0: i32) -> (i32, i32) {
    %c0_i32 = arith.constant 0 : i32
    %c0_i32_0 = arith.constant 0 : i32
    %c0_i32_1 = arith.constant 0 : i32
    return %c0_i32, %c0_i32_0 : i32, i32
  }
  func.func @transform_3(%arg0: i32) -> (i32, i32) {
    %c0_i32 = arith.constant 0 : i32
    %c0_i32_0 = arith.constant 0 : i32
    return %c0_i32, %arg0 : i32, i32
  }
}

</mosaic_0001>

<llo_original>
// kernel: tpu_custom_call.1
$region0: #{tpu_custom_call.1}
  #allocation0 [shape = 'u32[]', space=smem, size = 0x4, offset = 0x4, fixed_abs, tag = 'smem constant byte address 0x4 - core index']
  #allocation1 [shape = 'u32[144,128]{1,0:T(1,128)}', space=vmem, size = 0x12000, scoped, tag = 'internal scratch']
  #allocation2 [shape = 'f32[1,1]{1,0:T(1,128)S(1)}', space=vmem, size = 0x200, scoped, tag = 'scoped memory for tpu_custom_call.1']
  %s0 = inlined_call_operand.hbm [shape: f32[8,32], index: 0, kind: input, shape index: {}]
  %s1 = inlined_call_operand.vmem [shape: f32[1,32], index: 1, kind: input, shape index: {}]
  %s2 = inlined_call_operand.<no memory space> [shape: f32[1,1], index: 2, kind: input, shape index: {}]
  %s3 = inlined_call_operand.hbm [shape: f32[1,8], index: 3, kind: output, shape index: {}]
  %s4 = sld [smem:[#allocation0]]
  $region26: #{tpu_custom_call.1} parent=0
    _
  %s6 = ssub.s32 1, %s4
  %s7 = scalar_select 0, %s6, %s4
  %v8 = vstv %s2
  %9 = vst [vmem:[#allocation2] sm:$0x1] %v8
  $region1: #{tpu_custom_call.1} parent=0
    #allocation3 [shape = 'u8[4096]{0}', space=vmem, size = 0x1000, scoped, tag = 'input window, operand 0, single buffered']
    #allocation4 [shape = 's32[1]{0}', space=sflag, size = 0x4, scoped, tag = 'scoped memory for tpu_custom_call.1']
    #allocation5 [shape = 's32[1]{0}', space=sflag, size = 0x4, scoped, tag = 'scoped memory for tpu_custom_call.1']
    #allocation6 [shape = 'u8[512]{0}', space=vmem, size = 0x400, scoped, tag = 'output window, operand 0, single buffered']
    %10 = vsyncpa [#allocation4], 0
    %11 = vsyncpa [#allocation5], 0
    // Predicated region
    $region2: #{tpu_custom_call.1} parent=1 // pred_check
      _
    $region3: #{tpu_custom_call.1} parent=1 // pred_check_branch
      %13 = sbr.rel (0) target = $region5
    $region4: #{tpu_custom_call.1} parent=1 // pred_region
      %s15 = ssub.s32 128, 128
      %16 = vsyncadd [#allocation4], %s15
      %s18 = sshll.u32 [#allocation3], 4
      %s19 = int_to_ptr.vmem [resolvable:$true] %s18
      %21 = dma.hbm_to_vmem [thread:$0]  %s0, 128, %s19, [#allocation4]
    $region5: #{tpu_custom_call.1} parent=1 // pred_fallthru
      _
    // Predicated region
    $region6: #{tpu_custom_call.1} parent=1 // pred_check
      _
    $region7: #{tpu_custom_call.1} parent=1 // pred_check_branch
      %23 = sbr.rel (0) target = $region9
    $region8: #{tpu_custom_call.1} parent=1 // pred_region
      _
    $region9: #{tpu_custom_call.1} parent=1 // pred_fallthru
      _
    // Predicated region
    $region10: #{tpu_custom_call.1} parent=1 // pred_check
      _
    $region11: #{tpu_custom_call.1} parent=1 // pred_check_branch
      %25 = sbr.rel (0) target = $region13
    $region12: #{tpu_custom_call.1} parent=1 // pred_region
      _
    $region13: #{tpu_custom_call.1} parent=1 // pred_fallthru
      _
    // Predicated region
    $region14: #{tpu_custom_call.1} parent=1 // pred_check
      _
    $region15: #{tpu_custom_call.1} parent=1 // pred_check_branch
      %27 = sbr.rel (0) target = $region17
    $region16: #{tpu_custom_call.1} parent=1 // pred_region
      %28 = dma.done [#allocation4], 128
    $region17: #{tpu_custom_call.1} parent=1 // pred_fallthru
      _
    %v29 = vld [vmem:[%s1] sm:$0x1]
    %v30 = vld [vmem:[#allocation3] sm:$0xff]
    %v31 = vld [vmem:[#allocation2] sm:$0x1]
    %s32 = vtos %v31
    %v33 = vstv %s32
    %vm34 = vcmask 261120
    %v36 = vsel %vm34, %v29, 0
    %v39 = vsel %vm34, %v30, 0
    %41 = vmatprep.subr.mxu0 0.0
    %v42 = vand.u32 %v39, 4294901760
    %43 = vmatpush1.xpose.msra.mxu0 %v42
    %44 = vmatprep.subr.mxu0 0.0
    %45 = vmatpush1.xpose.msra.mxu0 0.0
    %46 = vmatprep.subr.mxu0 0.0
    %47 = vmatpush1.xpose.msra.mxu0 0.0
    %48 = vmatprep.subr.mxu0 0.0
    %49 = vmatpush1.xpose.msra.mxu0 0.0
    %50 = vmatprep.subr.mxu0 0.0
    %51 = vmatpush1.xpose.msra.mxu0 0.0
    %52 = vmatprep.subr.mxu0 0.0
    %53 = vmatpush1.xpose.msra.mxu0 0.0
    %54 = vmatprep.subr.mxu0 0.0
    %55 = vmatpush1.xpose.msra.mxu0 0.0
    %56 = vmatprep.subr.mxu0 0.0
    %57 = vmatpush1.xpose.msra.mxu0 0.0
    %58 = vmatprep.subr.mxu0 0.0
    %59 = vmatpush1.xpose.msra.mxu0 0.0
    %60 = vmatprep.subr.mxu0 0.0
    %61 = vmatpush1.xpose.msra.mxu0 0.0
    %62 = vmatprep.subr.mxu0 0.0
    %63 = vmatpush1.xpose.msra.mxu0 0.0
    %64 = vmatprep.subr.mxu0 0.0
    %65 = vmatpush1.xpose.msra.mxu0 0.0
    %66 = vmatprep.subr.mxu0 0.0
    %67 = vmatpush1.xpose.msra.mxu0 0.0
    %68 = vmatprep.subr.mxu0 0.0
    %69 = vmatpush1.xpose.msra.mxu0 0.0
    %70 = vmatprep.subr.mxu0 0.0
    %71 = vmatpush1.xpose.msra.mxu0 0.0
    %72 = vmatprep.subr.mxu0 0.0
    %73 = vmatpush1.xpose.msra.mxu0 0.0
    %74 = vmatprep.subr.mxu0 0.0
    %75 = vmatpush1.xpose.msra.mxu0 0.0
    %76 = vmatprep.subr.mxu0 0.0
    %77 = vmatpush1.xpose.msra.mxu0 0.0
    %78 = vmatprep.subr.mxu0 0.0
    %79 = vmatpush1.xpose.msra.mxu0 0.0
    %80 = vmatprep.subr.mxu0 0.0
    %81 = vmatpush1.xpose.msra.mxu0 0.0
    %82 = vmatprep.subr.mxu0 0.0
    %83 = vmatpush1.xpose.msra.mxu0 0.0
    %84 = vmatprep.subr.mxu0 0.0
    %85 = vmatpush1.xpose.msra.mxu0 0.0
    %86 = vmatprep.subr.mxu0 0.0
    %87 = vmatpush1.xpose.msra.mxu0 0.0
    %88 = vmatprep.subr.mxu0 0.0
    %89 = vmatpush1.xpose.msra.mxu0 0.0
    %90 = vmatprep.subr.mxu0 0.0
    %91 = vmatpush1.xpose.msra.mxu0 0.0
    %92 = vmatprep.subr.mxu0 0.0
    %93 = vmatpush1.xpose.msra.mxu0 0.0
    %94 = vmatprep.subr.mxu0 0.0
    %95 = vmatpush1.xpose.msra.mxu0 0.0
    %96 = vmatprep.subr.mxu0 0.0
    %97 = vmatpush1.xpose.msra.mxu0 0.0
    %98 = vmatprep.subr.mxu0 0.0
    %99 = vmatpush1.xpose.msra.mxu0 0.0
    %100 = vmatprep.subr.mxu0 0.0
    %101 = vmatpush1.xpose.msra.mxu0 0.0
    %102 = vmatprep.subr.mxu0 0.0
    %103 = vmatpush1.xpose.msra.mxu0 0.0
    %104 = vmatprep.subr.mxu0 0.0
    %105 = vmatpush1.xpose.msra.mxu0 0.0
    %106 = vmatprep.mubr.f32.mxu0 0.0
    %v107 = vand.u32 %v36, 4294901760
    %v108 = vsub.f32 %v36, %v107
    %v109 = vand.u32 %v108, 4294901760
    %v110 = vsub.f32 %v108, %v109
    %v111 = vand.u32 %v110, 4294901760
    %112 = vmatmul.mubr.f32.gmra.mrb[0].mxu0 %v111
    %v113 = vpop.f32.mrb[0].mxu0
    %v114 = vadd.f32 %v33, %v113
    %v115 = vpop.f32.mrb[0].mxu0
    %116 = vdwg.mxu0
    %117 = vmatprep.subr.mxu0 0.0
    %v118 = vand.u32 %v39, 4294901760
    %v119 = vsub.f32 %v39, %v118
    %v120 = vand.u32 %v119, 4294901760
    %v121 = vsub.f32 %v119, %v120
    %v122 = vand.u32 %v121, 4294901760
    %123 = vmatpush1.xpose.msra.mxu0 %v122
    %124 = vmatprep.subr.mxu0 0.0
    %125 = vmatpush1.xpose.msra.mxu0 0.0
    %126 = vmatprep.subr.mxu0 0.0
    %127 = vmatpush1.xpose.msra.mxu0 0.0
    %128 = vmatprep.subr.mxu0 0.0
    %129 = vmatpush1.xpose.msra.mxu0 0.0
    %130 = vmatprep.subr.mxu0 0.0
    %131 = vmatpush1.xpose.msra.mxu0 0.0
    %132 = vmatprep.subr.mxu0 0.0
    %133 = vmatpush1.xpose.msra.mxu0 0.0
    %134 = vmatprep.subr.mxu0 0.0
    %135 = vmatpush1.xpose.msra.mxu0 0.0
    %136 = vmatprep.subr.mxu0 0.0
    %137 = vmatpush1.xpose.msra.mxu0 0.0
    %138 = vmatprep.subr.mxu0 0.0
    %139 = vmatpush1.xpose.msra.mxu0 0.0
    %140 = vmatprep.subr.mxu0 0.0
    %141 = vmatpush1.xpose.msra.mxu0 0.0
    %142 = vmatprep.subr.mxu0 0.0
    %143 = vmatpush1.xpose.msra.mxu0 0.0
    %144 = vmatprep.subr.mxu0 0.0
    %145 = vmatpush1.xpose.msra.mxu0 0.0
    %146 = vmatprep.subr.mxu0 0.0
    %147 = vmatpush1.xpose.msra.mxu0 0.0
    %148 = vmatprep.subr.mxu0 0.0
    %149 = vmatpush1.xpose.msra.mxu0 0.0
    %150 = vmatprep.subr.mxu0 0.0
    %151 = vmatpush1.xpose.msra.mxu0 0.0
    %152 = vmatprep.subr.mxu0 0.0
    %153 = vmatpush1.xpose.msra.mxu0 0.0
    %154 = vmatprep.subr.mxu0 0.0
    %155 = vmatpush1.xpose.msra.mxu0 0.0
    %156 = vmatprep.subr.mxu0 0.0
    %157 = vmatpush1.xpose.msra.mxu0 0.0
    %158 = vmatprep.subr.mxu0 0.0
    %159 = vmatpush1.xpose.msra.mxu0 0.0
    %160 = vmatprep.subr.mxu0 0.0
    %161 = vmatpush1.xpose.msra.mxu0 0.0
    %162 = vmatprep.subr.mxu0 0.0
    %163 = vmatpush1.xpose.msra.mxu0 0.0
    %164 = vmatprep.subr.mxu0 0.0
    %165 = vmatpush1.xpose.msra.mxu0 0.0
    %166 = vmatprep.subr.mxu0 0.0
    %167 = vmatpush1.xpose.msra.mxu0 0.0
    %168 = vmatprep.subr.mxu0 0.0
    %169 = vmatpush1.xpose.msra.mxu0 0.0
    %170 = vmatprep.subr.mxu0 0.0
    %171 = vmatpush1.xpose.msra.mxu0 0.0
    %172 = vmatprep.subr.mxu0 0.0
    %173 = vmatpush1.xpose.msra.mxu0 0.0
    %174 = vmatprep.subr.mxu0 0.0
    %175 = vmatpush1.xpose.msra.mxu0 0.0
    %176 = vmatprep.subr.mxu0 0.0
    %177 = vmatpush1.xpose.msra.mxu0 0.0
    %178 = vmatprep.subr.mxu0 0.0
    %179 = vmatpush1.xpose.msra.mxu0 0.0
    %180 = vmatprep.subr.mxu0 0.0
    %181 = vmatpush1.xpose.msra.mxu0 0.0
    %182 = vmatprep.subr.mxu0 0.0
    %183 = vmatpush1.xpose.msra.mxu0 0.0
    %184 = vmatprep.subr.mxu0 0.0
    %185 = vmatpush1.xpose.msra.mxu0 0.0
    %186 = vmatprep.mubr.f32.mxu0 0.0
    %v187 = vand.u32 %v36, 4294901760
    %188 = vmatmul.mubr.f32.gmra.mrb[0].mxu0 %v187
    %v189 = vpop.f32.mrb[0].mxu0
    %v190 = vadd.f32 %v114, %v189
    %v191 = vpop.f32.mrb[0].mxu0
    %192 = vdwg.mxu0
    %193 = vmatprep.subr.mxu0 0.0
    %v194 = vand.u32 %v39, 4294901760
    %v195 = vsub.f32 %v39, %v194
    %196 = vmatpush1.xpose.msra.mxu0 %v195
    %197 = vmatprep.subr.mxu0 0.0
    %198 = vmatpush1.xpose.msra.mxu0 0.0
    %199 = vmatprep.subr.mxu0 0.0
    %200 = vmatpush1.xpose.msra.mxu0 0.0
    %201 = vmatprep.subr.mxu0 0.0
    %202 = vmatpush1.xpose.msra.mxu0 0.0
    %203 = vmatprep.subr.mxu0 0.0
    %204 = vmatpush1.xpose.msra.mxu0 0.0
    %205 = vmatprep.subr.mxu0 0.0
    %206 = vmatpush1.xpose.msra.mxu0 0.0
    %207 = vmatprep.subr.mxu0 0.0
    %208 = vmatpush1.xpose.msra.mxu0 0.0
    %209 = vmatprep.subr.mxu0 0.0
    %210 = vmatpush1.xpose.msra.mxu0 0.0
    %211 = vmatprep.subr.mxu0 0.0
    %212 = vmatpush1.xpose.msra.mxu0 0.0
    %213 = vmatprep.subr.mxu0 0.0
    %214 = vmatpush1.xpose.msra.mxu0 0.0
    %215 = vmatprep.subr.mxu0 0.0
    %216 = vmatpush1.xpose.msra.mxu0 0.0
    %217 = vmatprep.subr.mxu0 0.0
    %218 = vmatpush1.xpose.msra.mxu0 0.0
    %219 = vmatprep.subr.mxu0 0.0
    %220 = vmatpush1.xpose.msra.mxu0 0.0
    %221 = vmatprep.subr.mxu0 0.0
    %222 = vmatpush1.xpose.msra.mxu0 0.0
    %223 = vmatprep.subr.mxu0 0.0
    %224 = vmatpush1.xpose.msra.mxu0 0.0
    %225 = vmatprep.subr.mxu0 0.0
    %226 = vmatpush1.xpose.msra.mxu0 0.0
    %227 = vmatprep.subr.mxu0 0.0
    %228 = vmatpush1.xpose.msra.mxu0 0.0
    %229 = vmatprep.subr.mxu0 0.0
    %230 = vmatpush1.xpose.msra.mxu0 0.0
    %231 = vmatprep.subr.mxu0 0.0
    %232 = vmatpush1.xpose.msra.mxu0 0.0
    %233 = vmatprep.subr.mxu0 0.0
    %234 = vmatpush1.xpose.msra.mxu0 0.0
    %235 = vmatprep.subr.mxu0 0.0
    %236 = vmatpush1.xpose.msra.mxu0 0.0
    %237 = vmatprep.subr.mxu0 0.0
    %238 = vmatpush1.xpose.msra.mxu0 0.0
    %239 = vmatprep.subr.mxu0 0.0
    %240 = vmatpush1.xpose.msra.mxu0 0.0
    %241 = vmatprep.subr.mxu0 0.0
    %242 = vmatpush1.xpose.msra.mxu0 0.0
    %243 = vmatprep.subr.mxu0 0.0
    %244 = vmatpush1.xpose.msra.mxu0 0.0
    %245 = vmatprep.subr.mxu0 0.0
    %246 = vmatpush1.xpose.msra.mxu0 0.0
    %247 = vmatprep.subr.mxu0 0.0
    %248 = vmatpush1.xpose.msra.mxu0 0.0
    %249 = vmatprep.subr.mxu0 0.0
    %250 = vmatpush1.xpose.msra.mxu0 0.0
    %251 = vmatprep.subr.mxu0 0.0
    %252 = vmatpush1.xpose.msra.mxu0 0.0
    %253 = vmatprep.subr.mxu0 0.0
    %254 = vmatpush1.xpose.msra.mxu0 0.0
    %255 = vmatprep.subr.mxu0 0.0
    %256 = vmatpush1.xpose.msra.mxu0 0.0
    %257 = vmatprep.subr.mxu0 0.0
    %258 = vmatpush1.xpose.msra.mxu0 0.0
    %259 = vmatprep.mubr.f32.mxu0 0.0
    %v260 = vand.u32 %v36, 4294901760
    %v261 = vsub.f32 %v36, %v260
    %262 = vmatmul.mubr.f32.gmra.mrb[0].mxu0 %v261
    %v263 = vpop.f32.mrb[0].mxu0
    %v264 = vadd.f32 %v190, %v263
    %v265 = vpop.f32.mrb[0].mxu0
    %266 = vdwg.mxu0
    %267 = vmatprep.subr.mxu0 0.0
    %v268 = vand.u32 %v39, 4294901760
    %269 = vmatpush1.xpose.msra.mxu0 %v268
    %270 = vmatprep.subr.mxu0 0.0
    %271 = vmatpush1.xpose.msra.mxu0 0.0
    %272 = vmatprep.subr.mxu0 0.0
    %273 = vmatpush1.xpose.msra.mxu0 0.0
    %274 = vmatprep.subr.mxu0 0.0
    %275 = vmatpush1.xpose.msra.mxu0 0.0
    %276 = vmatprep.subr.mxu0 0.0
    %277 = vmatpush1.xpose.msra.mxu0 0.0
    %278 = vmatprep.subr.mxu0 0.0
    %279 = vmatpush1.xpose.msra.mxu0 0.0
    %280 = vmatprep.subr.mxu0 0.0
    %281 = vmatpush1.xpose.msra.mxu0 0.0
    %282 = vmatprep.subr.mxu0 0.0
    %283 = vmatpush1.xpose.msra.mxu0 0.0
    %284 = vmatprep.subr.mxu0 0.0
    %285 = vmatpush1.xpose.msra.mxu0 0.0
    %286 = vmatprep.subr.mxu0 0.0
    %287 = vmatpush1.xpose.msra.mxu0 0.0
    %288 = vmatprep.subr.mxu0 0.0
    %289 = vmatpush1.xpose.msra.mxu0 0.0
    %290 = vmatprep.subr.mxu0 0.0
    %291 = vmatpush1.xpose.msra.mxu0 0.0
    %292 = vmatprep.subr.mxu0 0.0
    %293 = vmatpush1.xpose.msra.mxu0 0.0
    %294 = vmatprep.subr.mxu0 0.0
    %295 = vmatpush1.xpose.msra.mxu0 0.0
    %296 = vmatprep.subr.mxu0 0.0
    %297 = vmatpush1.xpose.msra.mxu0 0.0
    %298 = vmatprep.subr.mxu0 0.0
    %299 = vmatpush1.xpose.msra.mxu0 0.0
    %300 = vmatprep.subr.mxu0 0.0
    %301 = vmatpush1.xpose.msra.mxu0 0.0
    %302 = vmatprep.subr.mxu0 0.0
    %303 = vmatpush1.xpose.msra.mxu0 0.0
    %304 = vmatprep.subr.mxu0 0.0
    %305 = vmatpush1.xpose.msra.mxu0 0.0
    %306 = vmatprep.subr.mxu0 0.0
    %307 = vmatpush1.xpose.msra.mxu0 0.0
    %308 = vmatprep.subr.mxu0 0.0
    %309 = vmatpush1.xpose.msra.mxu0 0.0
    %310 = vmatprep.subr.mxu0 0.0
    %311 = vmatpush1.xpose.msra.mxu0 0.0
    %312 = vmatprep.subr.mxu0 0.0
    %313 = vmatpush1.xpose.msra.mxu0 0.0
    %314 = vmatprep.subr.mxu0 0.0
    %315 = vmatpush1.xpose.msra.mxu0 0.0
    %316 = vmatprep.subr.mxu0 0.0
    %317 = vmatpush1.xpose.msra.mxu0 0.0
    %318 = vmatprep.subr.mxu0 0.0
    %319 = vmatpush1.xpose.msra.mxu0 0.0
    %320 = vmatprep.subr.mxu0 0.0
    %321 = vmatpush1.xpose.msra.mxu0 0.0
    %322 = vmatprep.subr.mxu0 0.0
    %323 = vmatpush1.xpose.msra.mxu0 0.0
    %324 = vmatprep.subr.mxu0 0.0
    %325 = vmatpush1.xpose.msra.mxu0 0.0
    %326 = vmatprep.subr.mxu0 0.0
    %327 = vmatpush1.xpose.msra.mxu0 0.0
    %328 = vmatprep.subr.mxu0 0.0
    %329 = vmatpush1.xpose.msra.mxu0 0.0
    %330 = vmatprep.subr.mxu0 0.0
    %331 = vmatpush1.xpose.msra.mxu0 0.0
    %332 = vmatprep.mubr.f32.mxu0 0.0
    %v333 = vand.u32 %v36, 4294901760
    %v334 = vsub.f32 %v36, %v333
    %v335 = vand.u32 %v334, 4294901760
    %336 = vmatmul.mubr.f32.gmra.mrb[0].mxu0 %v335
    %v337 = vpop.f32.mrb[0].mxu0
    %v338 = vadd.f32 %v264, %v337
    %v339 = vpop.f32.mrb[0].mxu0
    %340 = vdwg.mxu0
    %341 = vmatprep.subr.mxu0 0.0
    %v342 = vand.u32 %v39, 4294901760
    %v343 = vsub.f32 %v39, %v342
    %v344 = vand.u32 %v343, 4294901760
    %345 = vmatpush1.xpose.msra.mxu0 %v344
    %346 = vmatprep.subr.mxu0 0.0
    %347 = vmatpush1.xpose.msra.mxu0 0.0
    %348 = vmatprep.subr.mxu0 0.0
    %349 = vmatpush1.xpose.msra.mxu0 0.0
    %350 = vmatprep.subr.mxu0 0.0
    %351 = vmatpush1.xpose.msra.mxu0 0.0
    %352 = vmatprep.subr.mxu0 0.0
    %353 = vmatpush1.xpose.msra.mxu0 0.0
    %354 = vmatprep.subr.mxu0 0.0
    %355 = vmatpush1.xpose.msra.mxu0 0.0
    %356 = vmatprep.subr.mxu0 0.0
    %357 = vmatpush1.xpose.msra.mxu0 0.0
    %358 = vmatprep.subr.mxu0 0.0
    %359 = vmatpush1.xpose.msra.mxu0 0.0
    %360 = vmatprep.subr.mxu0 0.0
    %361 = vmatpush1.xpose.msra.mxu0 0.0
    %362 = vmatprep.subr.mxu0 0.0
    %363 = vmatpush1.xpose.msra.mxu0 0.0
    %364 = vmatprep.subr.mxu0 0.0
    %365 = vmatpush1.xpose.msra.mxu0 0.0
    %366 = vmatprep.subr.mxu0 0.0
    %367 = vmatpush1.xpose.msra.mxu0 0.0
    %368 = vmatprep.subr.mxu0 0.0
    %369 = vmatpush1.xpose.msra.mxu0 0.0
    %370 = vmatprep.subr.mxu0 0.0
    %371 = vmatpush1.xpose.msra.mxu0 0.0
    %372 = vmatprep.subr.mxu0 0.0
    %373 = vmatpush1.xpose.msra.mxu0 0.0
    %374 = vmatprep.subr.mxu0 0.0
    %375 = vmatpush1.xpose.msra.mxu0 0.0
    %376 = vmatprep.subr.mxu0 0.0
    %377 = vmatpush1.xpose.msra.mxu0 0.0
    %378 = vmatprep.subr.mxu0 0.0
    %379 = vmatpush1.xpose.msra.mxu0 0.0
    %380 = vmatprep.subr.mxu0 0.0
    %381 = vmatpush1.xpose.msra.mxu0 0.0
    %382 = vmatprep.subr.mxu0 0.0
    %383 = vmatpush1.xpose.msra.mxu0 0.0
    %384 = vmatprep.subr.mxu0 0.0
    %385 = vmatpush1.xpose.msra.mxu0 0.0
    %386 = vmatprep.subr.mxu0 0.0
    %387 = vmatpush1.xpose.msra.mxu0 0.0
    %388 = vmatprep.subr.mxu0 0.0
    %389 = vmatpush1.xpose.msra.mxu0 0.0
    %390 = vmatprep.subr.mxu0 0.0
    %391 = vmatpush1.xpose.msra.mxu0 0.0
    %392 = vmatprep.subr.mxu0 0.0
    %393 = vmatpush1.xpose.msra.mxu0 0.0
    %394 = vmatprep.subr.mxu0 0.0
    %395 = vmatpush1.xpose.msra.mxu0 0.0
    %396 = vmatprep.subr.mxu0 0.0
    %397 = vmatpush1.xpose.msra.mxu0 0.0
    %398 = vmatprep.subr.mxu0 0.0
    %399 = vmatpush1.xpose.msra.mxu0 0.0
    %400 = vmatprep.subr.mxu0 0.0
    %401 = vmatpush1.xpose.msra.mxu0 0.0
    %402 = vmatprep.subr.mxu0 0.0
    %403 = vmatpush1.xpose.msra.mxu0 0.0
    %404 = vmatprep.subr.mxu0 0.0
    %405 = vmatpush1.xpose.msra.mxu0 0.0
    %406 = vmatprep.subr.mxu0 0.0
    %407 = vmatpush1.xpose.msra.mxu0 0.0
    %408 = vmatprep.mubr.f32.mxu0 0.0
    %v409 = vand.u32 %v36, 4294901760
    %410 = vmatmul.mubr.f32.gmra.mrb[0].mxu0 %v409
    %v411 = vpop.f32.mrb[0].mxu0
    %v412 = vadd.f32 %v338, %v411
    %v413 = vpop.f32.mrb[0].mxu0
    %414 = vdwg.mxu0
    %415 = vmatprep.subr.mxu0 0.0
    %v416 = vand.u32 %v39, 4294901760
    %417 = vmatpush1.xpose.msra.mxu0 %v416
    %418 = vmatprep.subr.mxu0 0.0
    %419 = vmatpush1.xpose.msra.mxu0 0.0
    %420 = vmatprep.subr.mxu0 0.0
    %421 = vmatpush1.xpose.msra.mxu0 0.0
    %422 = vmatprep.subr.mxu0 0.0
    %423 = vmatpush1.xpose.msra.mxu0 0.0
    %424 = vmatprep.subr.mxu0 0.0
    %425 = vmatpush1.xpose.msra.mxu0 0.0
    %426 = vmatprep.subr.mxu0 0.0
    %427 = vmatpush1.xpose.msra.mxu0 0.0
    %428 = vmatprep.subr.mxu0 0.0
    %429 = vmatpush1.xpose.msra.mxu0 0.0
    %430 = vmatprep.subr.mxu0 0.0
    %431 = vmatpush1.xpose.msra.mxu0 0.0
    %432 = vmatprep.subr.mxu0 0.0
    %433 = vmatpush1.xpose.msra.mxu0 0.0
    %434 = vmatprep.subr.mxu0 0.0
    %435 = vmatpush1.xpose.msra.mxu0 0.0
    %436 = vmatprep.subr.mxu0 0.0
    %437 = vmatpush1.xpose.msra.mxu0 0.0
    %438 = vmatprep.subr.mxu0 0.0
    %439 = vmatpush1.xpose.msra.mxu0 0.0
    %440 = vmatprep.subr.mxu0 0.0
    %441 = vmatpush1.xpose.msra.mxu0 0.0
    %442 = vmatprep.subr.mxu0 0.0
    %443 = vmatpush1.xpose.msra.mxu0 0.0
    %444 = vmatprep.subr.mxu0 0.0
    %445 = vmatpush1.xpose.msra.mxu0 0.0
    %446 = vmatprep.subr.mxu0 0.0
    %447 = vmatpush1.xpose.msra.mxu0 0.0
    %448 = vmatprep.subr.mxu0 0.0
    %449 = vmatpush1.xpose.msra.mxu0 0.0
    %450 = vmatprep.subr.mxu0 0.0
    %451 = vmatpush1.xpose.msra.mxu0 0.0
    %452 = vmatprep.subr.mxu0 0.0
    %453 = vmatpush1.xpose.msra.mxu0 0.0
    %454 = vmatprep.subr.mxu0 0.0
    %455 = vmatpush1.xpose.msra.mxu0 0.0
    %456 = vmatprep.subr.mxu0 0.0
    %457 = vmatpush1.xpose.msra.mxu0 0.0
    %458 = vmatprep.subr.mxu0 0.0
    %459 = vmatpush1.xpose.msra.mxu0 0.0
    %460 = vmatprep.subr.mxu0 0.0
    %461 = vmatpush1.xpose.msra.mxu0 0.0
    %462 = vmatprep.subr.mxu0 0.0
    %463 = vmatpush1.xpose.msra.mxu0 0.0
    %464 = vmatprep.subr.mxu0 0.0
    %465 = vmatpush1.xpose.msra.mxu0 0.0
    %466 = vmatprep.subr.mxu0 0.0
    %467 = vmatpush1.xpose.msra.mxu0 0.0
    %468 = vmatprep.subr.mxu0 0.0
    %469 = vmatpush1.xpose.msra.mxu0 0.0
    %470 = vmatprep.subr.mxu0 0.0
    %471 = vmatpush1.xpose.msra.mxu0 0.0
    %472 = vmatprep.subr.mxu0 0.0
    %473 = vmatpush1.xpose.msra.mxu0 0.0
    %474 = vmatprep.subr.mxu0 0.0
    %475 = vmatpush1.xpose.msra.mxu0 0.0
    %476 = vmatprep.subr.mxu0 0.0
    %477 = vmatpush1.xpose.msra.mxu0 0.0
    %478 = vmatprep.subr.mxu0 0.0
    %479 = vmatpush1.xpose.msra.mxu0 0.0
    %480 = vmatprep.mubr.f32.mxu0 0.0
    %v481 = vand.u32 %v36, 4294901760
    %482 = vmatmul.mubr.f32.gmra.mrb[0].mxu0 %v481
    %v483 = vpop.f32.mrb[0].mxu0
    %v484 = vadd.f32 %v412, %v483
    %v485 = vpop.f32.mrb[0].mxu0
    %486 = vdwg.mxu0
    %v487 = vsub.f32 0.0, %v484
    %v488 = vmul.f32 %v487, 1.442695
    %v489 = vpow.pop %v488
    %v490 = vadd.f32 %v489, 1.0
    %v491 = vrcp.pop %v490
    %v492 = vmul.f32 1.0, %v491
    %vm493 = vcmask 57344
    %494 = vst.msk [vmem:[#allocation6] sm:$0x1] %vm493, %v492
    // Predicated region
    $region18: #{tpu_custom_call.1} parent=1 // pred_check
      _
    $region19: #{tpu_custom_call.1} parent=1 // pred_check_branch
      %496 = sbr.rel (0) target = $region21
    $region20: #{tpu_custom_call.1} parent=1 // pred_region
      %s498 = ssub.s32 16, 16
      %499 = vsyncadd [#allocation5], %s498
      %s501 = sshll.u32 [#allocation6], 4
      %s502 = int_to_ptr.vmem [resolvable:$true] %s501
      %504 = dma.vmem_to_hbm [thread:$0]  %s502, 16, %s3, [#allocation5]
    $region21: #{tpu_custom_call.1} parent=1 // pred_fallthru
      _
    // Predicated region
    $region22: #{tpu_custom_call.1} parent=1 // pred_check
      _
    $region23: #{tpu_custom_call.1} parent=1 // pred_check_branch
      %506 = sbr.rel (0) target = $region25
    $region24: #{tpu_custom_call.1} parent=1 // pred_region
      %507 = dma.done [#allocation5], 16
    $region25: #{tpu_custom_call.1} parent=1 // pred_fallthru
      _
    %508 = vsyncpa [#allocation4], 1
    %509 = vsyncpa [#allocation5], 1

</llo_original>
